<compile_context>
chip_gen: v6e
topology: v6e:2x2x1
jax: 0.10.0
libtpu: 0.0.40
codegen_flags: <defaults>
</compile_context>

<pallas_src>
import functools

import jax
import jax.numpy as jnp
from jax.experimental import pallas as pl
from jax.experimental.pallas import tpu as pltpu


LANE = 128      # vreg lane width: last-dim multiple for unmasked stores
SUBLANE = 8     # vreg sublane count: second-minor multiple
_VMEM_TILE_BUDGET = 20 * 1024 * 1024   # stay well under 32 MiB scoped default / 64 MiB v7x


def _round_up(x, m):
    return ((x + m - 1) // m) * m


def _num_tensorcores():
    """Best-effort TensorCore count for megacore batch sharding (2 per chip on v7x)."""
    try:
        kind = (getattr(jax.devices()[0], "device_kind", "") or "").lower()
        if "v7" in kind:
            return 2
    except Exception:
        pass
    return 1   # v5e / v6e: single TC, one grid step is optimal


def _fused_mlp_kernel(*refs, num_layers):
    """refs = (x_ref, w1, b1, w2, b2, ..., wN, bN, o_ref).

    Computes the full MLP for one batch tile. x arrives in bf16; each matmul runs
    on the MXU in bf16 with f32 accumulation; bias add and ReLU stay in f32 on the
    VPU. Every intermediate activation lives in vregs/VMEM (no HBM round trips).
    """
    x_ref = refs[0]
    o_ref = refs[-1]

    h = x_ref[...]                              # bf16 [tile_b, Din]
    for i in range(num_layers):
        w_ref = refs[1 + 2 * i]                 # bf16 [Din_i, Dout_i]
        b_ref = refs[2 + 2 * i]                 # f32  [1, Dout_i]
        y = jnp.dot(h, w_ref[...], preferred_element_type=jnp.float32)
        y = y + b_ref[...]                      # f32 bias add (broadcast over rows)
        if i != num_layers - 1:
            y = jnp.maximum(y, 0.0)             # ReLU; Dropout is identity in eval mode
            h = y.astype(w_ref.dtype)           # back to bf16 for the next MXU matmul
        else:
            h = y
    o_ref[...] = h.astype(o_ref.dtype)


def fused_mlp_forward(x, kernel_params, out_feats, *, block_batch=1024,
                      num_batch_tiles=None, out_dtype=jnp.float32):
    """x: [B, Din]; kernel_params: list of (W [Din_i, Dout_i] bf16, b [1, Dout_i] f32).

    The last layer is expected to be lane-padded (see pad_output_layer); the wrapper
    slices the output back to [B, out_feats].
    """
    B, Din = x.shape
    num_layers = len(kernel_params)
    out_cols = kernel_params[-1][0].shape[1]       # lane-padded output width
    out_itemsize = jnp.dtype(out_dtype).itemsize

    # Feed x as bf16: the MXU consumes bf16 anyway, so DMAing f32 would be pure waste.
    if x.dtype != jnp.bfloat16:
        x = x.astype(jnp.bfloat16)

    # ---- choose the batch tile ------------------------------------------------
    # VMEM guard: double-buffered x/out tiles + (double-buffered) resident weights
    # must fit comfortably in scoped VMEM on every gen (incl. v7x's 64 MiB).
    weight_bytes = sum(w.size * w.dtype.itemsize + b.size * b.dtype.itemsize
                       for w, b in kernel_params)
    per_row_bytes = 2 * Din * 2 + 2 * out_cols * out_itemsize
    row_cap = max(SUBLANE,
                  ((_VMEM_TILE_BUDGET - 2 * weight_bytes) // per_row_bytes)
                  // SUBLANE * SUBLANE)

    n_tiles = num_batch_tiles if num_batch_tiles is not None else _num_tensorcores()
    B8 = _round_up(B, SUBLANE)
    tile_b = _round_up(pl.cdiv(B8, n_tiles), SUBLANE)   # one tile per TensorCore if it fits
    tile_b = min(tile_b, block_batch, row_cap)
    B_pad = _round_up(B8, tile_b)
    grid = (B_pad // tile_b,)

    if B_pad != B:
        x = jnp.pad(x, ((0, B_pad - B), (0, 0)))

    # BlockSpecs: x/out tiled over batch; weights/biases full-array with a constant
    # index_map (fetched once, resident in VMEM across all grid steps).
    in_specs = [pl.BlockSpec((tile_b, Din), lambda i: (i, 0))]
    flat_params = []
    for w, b in kernel_params:
        in_specs.append(pl.BlockSpec(w.shape, lambda i: (0, 0)))
        in_specs.append(pl.BlockSpec(b.shape, lambda i: (0, 0)))
        flat_params.extend([w, b])
    out_specs = pl.BlockSpec((tile_b, out_cols), lambda i: (i, 0))

    flops = 2 * B_pad * sum(w.shape[0] * w.shape[1] for w, _ in kernel_params)
    bytes_accessed = (x.size * x.dtype.itemsize
                      + B_pad * out_cols * out_itemsize
                      + weight_bytes)

    out = pl.pallas_call(
        functools.partial(_fused_mlp_kernel, num_layers=num_layers),
        out_shape=jax.ShapeDtypeStruct((B_pad, out_cols), out_dtype),
        grid=grid,
        in_specs=in_specs,
        out_specs=out_specs,
        compiler_params=pltpu.CompilerParams(
            dimension_semantics=("parallel",)),
        cost_estimate=pl.CostEstimate(
            flops=flops, transcendentals=0, bytes_accessed=bytes_accessed),
    )(x, *flat_params)

    if B_pad != B or out_cols != out_feats:
        out = out[:B, :out_feats]
    return out


def init_simple_mlp_params(key, in_feats, out_feats, layers):
    """Parameter init matching SimpleMLPNet's layer shapes.

    Weights are pre-transposed to [Din, Dout] (vs PyTorch's [Dout, Din]) and stored
    in bf16 for the MXU; biases are pre-reshaped to [1, Dout] in f32. All layout
    prep is hoisted here (done once, never per forward call).
    """
    dims = []
    feats = in_feats
    for _ in range(layers - 1):
        dims.append((feats, feats // 2))
        feats = int(feats // 2)
    dims.append((feats, out_feats))

    params = []
    for din, dout in dims:
        key, kw, kb = jax.random.split(key, 3)
        bound = 1.0 / (din ** 0.5)
        w = jax.random.uniform(kw, (din, dout), jnp.float32, -bound, bound)
        b = jax.random.uniform(kb, (1, dout), jnp.float32, -bound, bound)
        params.append((w.astype(jnp.bfloat16), b))
    return params


def pad_output_layer(params, lane=LANE):
    """Zero-pad the last layer's W/b to a multiple of 128 output columns (once, at
    init) so the kernel's output stores are lane-dense unmasked vst instead of
    masked partial stores. Padded columns are exactly zero and sliced off later."""
    w, b = params[-1]
    dout = w.shape[1]
    dout_p = _round_up(dout, lane)
    if dout_p == dout:
        return list(params)
    w_p = jnp.pad(w, ((0, 0), (0, dout_p - dout)))
    b_p = jnp.pad(b, ((0, 0), (0, dout_p - dout)))
    return list(params[:-1]) + [(w_p, b_p)]


def simple_mlp_reference(x, params):
    """Pure-JAX reference using the same bf16-matmul / f32-accumulate recipe
    (note: this is bf16 parity, not f32 PyTorch parity)."""
    n = len(params)
    h = x.astype(jnp.bfloat16)
    for i, (w, b) in enumerate(params):
        h = jnp.dot(h, w, preferred_element_type=jnp.float32) + b
        if i != n - 1:
            h = jnp.maximum(h, 0.0).astype(jnp.bfloat16)
    return h


if __name__ == "__main__":
    # SimpleMLPNet(in_feats=64, out_feats=16, layers=3, dropout=0.1), eval mode.
    in_feats, out_feats, layers = 64, 16, 3
    batch = 16

    key = jax.random.PRNGKey(0)
    key, kx = jax.random.split(key)
    x = jax.random.normal(kx, (batch, in_feats), jnp.float32)

    params = init_simple_mlp_params(key, in_feats, out_feats, layers)
    kernel_params = pad_output_layer(params)   # lane-dense output prep, done once

    out = fused_mlp_forward(x, kernel_params, out_feats)
    out = jax.block_until_ready(out)

    ref = simple_mlp_reference(x, params)
    assert out.shape == (batch, out_feats), out.shape
    assert jnp.allclose(out, ref, atol=1e-3, rtol=1e-3), "mismatch vs reference"

    print("KERNEL_OK")
</pallas_src>

<mosaic_0001>
module attributes {stable_mosaic.version = 11 : i64} {
  func.func @_fused_mlp_kernel(%arg0: i32, %arg1: memref<16x64xbf16, #tpu.memory_space<vmem>>, %arg2: memref<64x32xbf16, #tpu.memory_space<vmem>>, %arg3: memref<1x32xf32, #tpu.memory_space<vmem>>, %arg4: memref<32x16xbf16, #tpu.memory_space<vmem>>, %arg5: memref<1x16xf32, #tpu.memory_space<vmem>>, %arg6: memref<16x128xbf16, #tpu.memory_space<vmem>>, %arg7: memref<1x128xf32, #tpu.memory_space<vmem>>, %arg8: memref<16x128xf32, #tpu.memory_space<vmem>>) attributes {dimension_semantics = [#tpu.dimension_semantics<parallel>], iteration_bounds = array<i64: 1>, scalar_prefetch = 0 : i64, scratch_operands = 0 : i64, tpu.core_type = #tpu.core_type<tc>, window_params = [{transform_indices = @transform_0, window_bounds = array<i64: 16, 64>}, {pipeline_mode = #tpu.pipeline_mode<synchronous>, transform_indices = @transform_1, window_bounds = array<i64: 64, 32>}, {pipeline_mode = #tpu.pipeline_mode<synchronous>, transform_indices = @transform_2, window_bounds = array<i64: 1, 32>}, {pipeline_mode = #tpu.pipeline_mode<synchronous>, transform_indices = @transform_3, window_bounds = array<i64: 32, 16>}, {pipeline_mode = #tpu.pipeline_mode<synchronous>, transform_indices = @transform_4, window_bounds = array<i64: 1, 16>}, {pipeline_mode = #tpu.pipeline_mode<synchronous>, transform_indices = @transform_5, window_bounds = array<i64: 16, 128>}, {pipeline_mode = #tpu.pipeline_mode<synchronous>, transform_indices = @transform_6, window_bounds = array<i64: 1, 128>}, {transform_indices = @transform_7, window_bounds = array<i64: 16, 128>}]} {
    %c0 = arith.constant 0 : index
    %c0_0 = arith.constant 0 : index
    %0 = vector.load %arg1[%c0, %c0_0] : memref<16x64xbf16, #tpu.memory_space<vmem>>, vector<16x64xbf16>
    %c0_1 = arith.constant 0 : index
    %c0_2 = arith.constant 0 : index
    %1 = vector.load %arg2[%c0_1, %c0_2] : memref<64x32xbf16, #tpu.memory_space<vmem>>, vector<64x32xbf16>
    %cst = arith.constant dense<0.000000e+00> : vector<16x32xf32>
    %2 = tpu.matmul %0, %1, %cst {dimension_numbers = #tpu.dot_dimension_numbers<[1], [0], [0], [1], [0, 0, 1, 1], [], []>} : vector<16x64xbf16>, vector<64x32xbf16>, vector<16x32xf32> -> vector<16x32xf32>
    %c0_3 = arith.constant 0 : index
    %c0_4 = arith.constant 0 : index
    %3 = vector.load %arg3[%c0_3, %c0_4] : memref<1x32xf32, #tpu.memory_space<vmem>>, vector<1x32xf32>
    %4 = vector.broadcast %3 : vector<1x32xf32> to vector<16x32xf32>
    %5 = arith.addf %2, %4 : vector<16x32xf32>
    %cst_5 = arith.constant 0.000000e+00 : f32
    %6 = vector.broadcast %cst_5 : f32 to vector<16x32xf32>
    %7 = arith.maximumf %5, %6 : vector<16x32xf32>
    %8 = arith.truncf %7 : vector<16x32xf32> to vector<16x32xbf16>
    %c0_6 = arith.constant 0 : index
    %c0_7 = arith.constant 0 : index
    %9 = vector.load %arg4[%c0_6, %c0_7] : memref<32x16xbf16, #tpu.memory_space<vmem>>, vector<32x16xbf16>
    %cst_8 = arith.constant dense<0.000000e+00> : vector<16x16xf32>
    %10 = tpu.matmul %8, %9, %cst_8 {dimension_numbers = #tpu.dot_dimension_numbers<[1], [0], [0], [1], [0, 0, 1, 1], [], []>} : vector<16x32xbf16>, vector<32x16xbf16>, vector<16x16xf32> -> vector<16x16xf32>
    %c0_9 = arith.constant 0 : index
    %c0_10 = arith.constant 0 : index
    %11 = vector.load %arg5[%c0_9, %c0_10] : memref<1x16xf32, #tpu.memory_space<vmem>>, vector<1x16xf32>
    %12 = vector.broadcast %11 : vector<1x16xf32> to vector<16x16xf32>
    %13 = arith.addf %10, %12 : vector<16x16xf32>
    %cst_11 = arith.constant 0.000000e+00 : f32
    %14 = vector.broadcast %cst_11 : f32 to vector<16x16xf32>
    %15 = arith.maximumf %13, %14 : vector<16x16xf32>
    %16 = arith.truncf %15 : vector<16x16xf32> to vector<16x16xbf16>
    %c0_12 = arith.constant 0 : index
    %c0_13 = arith.constant 0 : index
    %17 = vector.load %arg6[%c0_12, %c0_13] : memref<16x128xbf16, #tpu.memory_space<vmem>>, vector<16x128xbf16>
    %cst_14 = arith.constant dense<0.000000e+00> : vector<16x128xf32>
    %18 = tpu.matmul %16, %17, %cst_14 {dimension_numbers = #tpu.dot_dimension_numbers<[1], [0], [0], [1], [0, 0, 1, 1], [], []>} : vector<16x16xbf16>, vector<16x128xbf16>, vector<16x128xf32> -> vector<16x128xf32>
    %c0_15 = arith.constant 0 : index
    %c0_16 = arith.constant 0 : index
    %19 = vector.load %arg7[%c0_15, %c0_16] : memref<1x128xf32, #tpu.memory_space<vmem>>, vector<1x128xf32>
    %20 = vector.broadcast %19 : vector<1x128xf32> to vector<16x128xf32>
    %21 = arith.addf %18, %20 : vector<16x128xf32>
    %c0_17 = arith.constant 0 : index
    %c0_18 = arith.constant 0 : index
    %22 = vector.load %arg8[%c0_17, %c0_18] : memref<16x128xf32, #tpu.memory_space<vmem>>, vector<16x128xf32>
    tpu.vector_store %arg8[%c0_17, %c0_18], %21 {strides = array<i32>} : memref<16x128xf32, #tpu.memory_space<vmem>>, vector<16x128xf32>,
    return
  }
  func.func @transform_0(%arg0: i32) -> (i32, i32) {
    %c0_i32 = arith.constant 0 : i32
    %c0_i32_0 = arith.constant 0 : i32
    return %arg0, %c0_i32 : i32, i32
  }
  func.func @transform_1(%arg0: i32) -> (i32, i32) {
    %c0_i32 = arith.constant 0 : i32
    %c0_i32_0 = arith.constant 0 : i32
    %c0_i32_1 = arith.constant 0 : i32
    return %c0_i32, %c0_i32_0 : i32, i32
  }
  func.func @transform_2(%arg0: i32) -> (i32, i32) {
    %c0_i32 = arith.constant 0 : i32
    %c0_i32_0 = arith.constant 0 : i32
    %c0_i32_1 = arith.constant 0 : i32
    return %c0_i32, %c0_i32_0 : i32, i32
  }
  func.func @transform_3(%arg0: i32) -> (i32, i32) {
    %c0_i32 = arith.constant 0 : i32
    %c0_i32_0 = arith.constant 0 : i32
    %c0_i32_1 = arith.constant 0 : i32
    return %c0_i32, %c0_i32_0 : i32, i32
  }
  func.func @transform_4(%arg0: i32) -> (i32, i32) {
    %c0_i32 = arith.constant 0 : i32
    %c0_i32_0 = arith.constant 0 : i32
    %c0_i32_1 = arith.constant 0 : i32
    return %c0_i32, %c0_i32_0 : i32, i32
  }
  func.func @transform_5(%arg0: i32) -> (i32, i32) {
    %c0_i32 = arith.constant 0 : i32
    %c0_i32_0 = arith.constant 0 : i32
    %c0_i32_1 = arith.constant 0 : i32
    return %c0_i32, %c0_i32_0 : i32, i32
  }
  func.func @transform_6(%arg0: i32) -> (i32, i32) {
    %c0_i32 = arith.constant 0 : i32
    %c0_i32_0 = arith.constant 0 : i32
    %c0_i32_1 = arith.constant 0 : i32
    return %c0_i32, %c0_i32_0 : i32, i32
  }
  func.func @transform_7(%arg0: i32) -> (i32, i32) {
    %c0_i32 = arith.constant 0 : i32
    %c0_i32_0 = arith.constant 0 : i32
    return %arg0, %c0_i32 : i32, i32
  }
}

</mosaic_0001>

<llo_original>
// kernel: tpu_custom_call.1
$region0: #{tpu_custom_call.1}
  #allocation0 [shape = 'u32[]', space=smem, size = 0x4, offset = 0x4, fixed_abs, tag = 'smem constant byte address 0x4 - core index']
  #allocation1 [shape = 'u32[144,128]{1,0:T(1,128)}', space=vmem, size = 0x12000, scoped, tag = 'internal scratch']
  %s0 = inlined_call_operand.vmem [shape: bf16[16,64], index: 0, kind: input, shape index: {}]
  %s1 = inlined_call_operand.vmem [shape: bf16[64,32], index: 1, kind: input, shape index: {}]
  %s2 = inlined_call_operand.vmem [shape: f32[1,32], index: 2, kind: input, shape index: {}]
  %s3 = inlined_call_operand.vmem [shape: bf16[32,16], index: 3, kind: input, shape index: {}]
  %s4 = inlined_call_operand.vmem [shape: f32[1,16], index: 4, kind: input, shape index: {}]
  %s5 = inlined_call_operand.vmem [shape: bf16[16,128], index: 5, kind: input, shape index: {}]
  %s6 = inlined_call_operand.vmem [shape: f32[1,128], index: 6, kind: input, shape index: {}]
  %s7 = inlined_call_operand.hbm [shape: f32[16,128], index: 7, kind: output, shape index: {}]
  %s8 = sld [smem:[#allocation0]]
  $region38: #{tpu_custom_call.1} parent=0
    _
  %s10 = ssub.s32 1, %s8
  %s11 = scalar_select 0, %s10, %s8
  $region1: #{tpu_custom_call.1} parent=0
    #allocation2 [shape = 'u8[8192]{0}', space=vmem, size = 0x2000, scoped, tag = 'output window, operand 0, single buffered']
    #allocation3 [shape = 's32[1]{0}', space=sflag, size = 0x4, scoped, tag = 'scoped memory for tpu_custom_call.1']
    %12 = vsyncpa [#allocation3], 0
    // Predicated region
    $region2: #{tpu_custom_call.1} parent=1 // pred_check
      _
    $region3: #{tpu_custom_call.1} parent=1 // pred_check_branch
      %14 = sbr.rel (0) target = $region5
    $region4: #{tpu_custom_call.1} parent=1 // pred_region
      _
    $region5: #{tpu_custom_call.1} parent=1 // pred_fallthru
      _
    // Predicated region
    $region6: #{tpu_custom_call.1} parent=1 // pred_check
      _
    $region7: #{tpu_custom_call.1} parent=1 // pred_check_branch
      %16 = sbr.rel (0) target = $region9
    $region8: #{tpu_custom_call.1} parent=1 // pred_region
      _
    $region9: #{tpu_custom_call.1} parent=1 // pred_fallthru
      _
    // Predicated region
    $region10: #{tpu_custom_call.1} parent=1 // pred_check
      _
    $region11: #{tpu_custom_call.1} parent=1 // pred_check_branch
      %18 = sbr.rel (0) target = $region13
    $region12: #{tpu_custom_call.1} parent=1 // pred_region
      _
    $region13: #{tpu_custom_call.1} parent=1 // pred_fallthru
      _
    // Predicated region
    $region14: #{tpu_custom_call.1} parent=1 // pred_check
      _
    $region15: #{tpu_custom_call.1} parent=1 // pred_check_branch
      %20 = sbr.rel (0) target = $region17
    $region16: #{tpu_custom_call.1} parent=1 // pred_region
      _
    $region17: #{tpu_custom_call.1} parent=1 // pred_fallthru
      _
    // Predicated region
    $region18: #{tpu_custom_call.1} parent=1 // pred_check
      _
    $region19: #{tpu_custom_call.1} parent=1 // pred_check_branch
      %22 = sbr.rel (0) target = $region21
    $region20: #{tpu_custom_call.1} parent=1 // pred_region
      _
    $region21: #{tpu_custom_call.1} parent=1 // pred_fallthru
      _
    // Predicated region
    $region22: #{tpu_custom_call.1} parent=1 // pred_check
      _
    $region23: #{tpu_custom_call.1} parent=1 // pred_check_branch
      %24 = sbr.rel (0) target = $region25
    $region24: #{tpu_custom_call.1} parent=1 // pred_region
      _
    $region25: #{tpu_custom_call.1} parent=1 // pred_fallthru
      _
    // Predicated region
    $region26: #{tpu_custom_call.1} parent=1 // pred_check
      _
    $region27: #{tpu_custom_call.1} parent=1 // pred_check_branch
      %26 = sbr.rel (0) target = $region29
    $region28: #{tpu_custom_call.1} parent=1 // pred_region
      _
    $region29: #{tpu_custom_call.1} parent=1 // pred_fallthru
      _
    %v28 = vld [vmem:[%s0] sm:$0xf]
    %v29 = vld [vmem:[%s0 + $0x4] sm:$0xf]
    %v30 = vld [vmem:[%s1] sm:$0xf]
    %v31 = vld [vmem:[%s1 + $0x4] sm:$0xf]
    %v32 = vld [vmem:[%s1 + $0x8] sm:$0xf]
    %v33 = vld [vmem:[%s1 + $0xc] sm:$0xf]
    %v34 = vld [vmem:[%s1 + $0x10] sm:$0xf]
    %v35 = vld [vmem:[%s1 + $0x14] sm:$0xf]
    %v36 = vld [vmem:[%s1 + $0x18] sm:$0xf]
    %v37 = vld [vmem:[%s1 + $0x1c] sm:$0xf]
    %v38 = vld [vmem:[%s2] sm:$0x1]
    %v40 = vlaneseq
    %v41 = vshrl.u32 %v40, 7
    %v42 = vsub.s32 0, %v41
    %v43 = vrot.slane %v38, %v42
    %v47 = vunpack.c.l.b16 %v28
    %v48 = vunpack.c.l.b16 %v29
    %v49 = vpack.c.b16 %v48, %v47
    %v58 = vunpack.c.l.b16 %v30
    %v59 = vunpack.c.l.b16 %v31
    %v60 = vunpack.c.l.b16 %v32
    %v61 = vunpack.c.l.b16 %v33
    %v62 = vunpack.c.l.b16 %v34
    %v63 = vunpack.c.l.b16 %v35
    %v64 = vunpack.c.l.b16 %v36
    %v65 = vunpack.c.l.b16 %v37
    %v66 = vpack.c.b16 %v59, %v58
    %v67 = vpack.c.b16 %v61, %v60
    %v68 = vpack.c.b16 %v63, %v62
    %v69 = vpack.c.b16 %v65, %v64
    %vm74 = vcmask 523264
    %v76 = vsel %vm74, %v49, 0
    %78 = vmatprep.subr.bf16.mxu0 0
    %79 = vmatpush1.bf16.msra.mxu0 0
    %80 = vmatprep.subr.bf16.mxu0 0
    %81 = vmatpush1.bf16.msra.mxu0 0
    %82 = vmatprep.subr.bf16.mxu0 0
    %83 = vmatpush1.bf16.msra.mxu0 0
    %84 = vmatprep.subr.bf16.mxu0 0
    %85 = vmatpush1.bf16.msra.mxu0 0
    %86 = vmatprep.subr.bf16.mxu0 0
    %87 = vmatpush1.bf16.msra.mxu0 %v69
    %88 = vmatprep.subr.bf16.mxu0 0
    %89 = vmatpush1.bf16.msra.mxu0 %v68
    %90 = vmatprep.subr.bf16.mxu0 0
    %91 = vmatpush1.bf16.msra.mxu0 %v67
    %92 = vmatprep.subr.bf16.mxu0 0
    %93 = vmatpush1.bf16.msra.mxu0 %v66
    %94 = vmatprep.subr.bf16.mxu0 0
    %95 = vmatpush2.bf16.msra.mxu0 0
    %96 = vmatprep.subr.bf16.mxu0 0
    %97 = vmatpush2.bf16.msra.mxu0 0
    %98 = vmatprep.subr.bf16.mxu0 0
    %99 = vmatpush2.bf16.msra.mxu0 0
    %100 = vmatprep.subr.bf16.mxu0 0
    %101 = vmatpush2.bf16.msra.mxu0 0
    %102 = vmatprep.subr.bf16.mxu0 0
    %103 = vmatpush2.bf16.msra.mxu0 0
    %104 = vmatprep.subr.bf16.mxu0 0
    %105 = vmatpush2.bf16.msra.mxu0 0
    %106 = vmatprep.subr.bf16.mxu0 0
    %107 = vmatpush2.bf16.msra.mxu0 0
    %108 = vmatprep.subr.bf16.mxu0 0
    %109 = vmatpush2.bf16.msra.mxu0 0
    %110 = vmatprep.mubr.bf16.mxu0 0
    %111 = vmatmul.mubr.bf16.gmra.mxu0 %v76
    %v112 = vpop.f32.mrf.mxu0
    %v113 = vadd.f32 %v43, %v112
    %v114 = vpop.f32.mrf.mxu0
    %v115 = vpop.f32.mrf.mxu0
    %v116 = vadd.f32 %v43, %v115
    %v117 = vpop.f32.mrf.mxu0
    %118 = vdwg.mxu0
    %v119 = vmax.f32 %v113, 0.0
    %v120 = vmax.f32 %v116, 0.0
    %v121 = vpack.c.bf16 %v120, %v119
    %v122 = vld [vmem:[%s3] sm:$0xf]
    %v123 = vld [vmem:[%s3 + $0x4] sm:$0xf]
    %v124 = vld [vmem:[%s3 + $0x8] sm:$0xf]
    %v125 = vld [vmem:[%s3 + $0xc] sm:$0xf]
    %v126 = vld [vmem:[%s4] sm:$0x1]
    %v128 = vlaneseq
    %v129 = vshrl.u32 %v128, 7
    %v130 = vsub.s32 0, %v129
    %v131 = vrot.slane %v126, %v130
    %v137 = vunpack.c.l.b16 %v122
    %v138 = vunpack.c.l.b16 %v123
    %v139 = vunpack.c.l.b16 %v124
    %v140 = vunpack.c.l.b16 %v125
    %v141 = vpack.c.b16 %v138, %v137
    %v142 = vpack.c.b16 %v140, %v139
    %vm145 = vcmask 261120
    %v147 = vsel %vm145, %v121, 0
    %149 = vmatprep.subr.bf16.mxu0 0
    %150 = vmatpush1.bf16.msra.mxu0 0
    %151 = vmatprep.subr.bf16.mxu0 0
    %152 = vmatpush1.bf16.msra.mxu0 0
    %153 = vmatprep.subr.bf16.mxu0 0
    %154 = vmatpush1.bf16.msra.mxu0 0
    %155 = vmatprep.subr.bf16.mxu0 0
    %156 = vmatpush1.bf16.msra.mxu0 0
    %157 = vmatprep.subr.bf16.mxu0 0
    %158 = vmatpush1.bf16.msra.mxu0 0
    %159 = vmatprep.subr.bf16.mxu0 0
    %160 = vmatpush1.bf16.msra.mxu0 0
    %161 = vmatprep.subr.bf16.mxu0 0
    %162 = vmatpush1.bf16.msra.mxu0 %v142
    %163 = vmatprep.subr.bf16.mxu0 0
    %164 = vmatpush1.bf16.msra.mxu0 %v141
    %165 = vmatprep.subr.bf16.mxu0 0
    %166 = vmatpush2.bf16.msra.mxu0 0
    %167 = vmatprep.subr.bf16.mxu0 0
    %168 = vmatpush2.bf16.msra.mxu0 0
    %169 = vmatprep.subr.bf16.mxu0 0
    %170 = vmatpush2.bf16.msra.mxu0 0
    %171 = vmatprep.subr.bf16.mxu0 0
    %172 = vmatpush2.bf16.msra.mxu0 0
    %173 = vmatprep.subr.bf16.mxu0 0
    %174 = vmatpush2.bf16.msra.mxu0 0
    %175 = vmatprep.subr.bf16.mxu0 0
    %176 = vmatpush2.bf16.msra.mxu0 0
    %177 = vmatprep.subr.bf16.mxu0 0
    %178 = vmatpush2.bf16.msra.mxu0 0
    %179 = vmatprep.subr.bf16.mxu0 0
    %180 = vmatpush2.bf16.msra.mxu0 0
    %181 = vmatprep.mubr.bf16.mxu0 0
    %182 = vmatmul.mubr.bf16.gmra.mxu0 %v147
    %v183 = vpop.f32.mrf.mxu0
    %v184 = vadd.f32 %v131, %v183
    %v185 = vpop.f32.mrf.mxu0
    %v186 = vpop.f32.mrf.mxu0
    %v187 = vadd.f32 %v131, %v186
    %v188 = vpop.f32.mrf.mxu0
    %189 = vdwg.mxu0
    %v190 = vmax.f32 %v184, 0.0
    %v191 = vmax.f32 %v187, 0.0
    %v192 = vpack.c.bf16 %v191, %v190
    %v193 = vld [vmem:[%s5] sm:$0xf]
    %v194 = vld [vmem:[%s5 + $0x4] sm:$0xf]
    %v195 = vld [vmem:[%s6] sm:$0x1]
    %v197 = vlaneseq
    %v198 = vshrl.u32 %v197, 7
    %v199 = vsub.s32 0, %v198
    %v200 = vrot.slane %v195, %v199
    %v204 = vunpack.c.l.b16 %v193
    %v205 = vunpack.c.l.b16 %v194
    %v206 = vpack.c.b16 %v205, %v204
    %vm208 = vcmask 130048
    %v210 = vsel %vm208, %v192, 0
    %212 = vmatprep.subr.bf16.mxu0 0
    %213 = vmatpush1.bf16.msra.mxu0 0
    %214 = vmatprep.subr.bf16.mxu0 0
    %215 = vmatpush1.bf16.msra.mxu0 0
    %216 = vmatprep.subr.bf16.mxu0 0
    %217 = vmatpush1.bf16.msra.mxu0 0
    %218 = vmatprep.subr.bf16.mxu0 0
    %219 = vmatpush1.bf16.msra.mxu0 0
    %220 = vmatprep.subr.bf16.mxu0 0
    %221 = vmatpush1.bf16.msra.mxu0 0
    %222 = vmatprep.subr.bf16.mxu0 0
    %223 = vmatpush1.bf16.msra.mxu0 0
    %224 = vmatprep.subr.bf16.mxu0 0
    %225 = vmatpush1.bf16.msra.mxu0 0
    %226 = vmatprep.subr.bf16.mxu0 0
    %227 = vmatpush1.bf16.msra.mxu0 %v206
    %228 = vmatprep.subr.bf16.mxu0 0
    %229 = vmatpush2.bf16.msra.mxu0 0
    %230 = vmatprep.subr.bf16.mxu0 0
    %231 = vmatpush2.bf16.msra.mxu0 0
    %232 = vmatprep.subr.bf16.mxu0 0
    %233 = vmatpush2.bf16.msra.mxu0 0
    %234 = vmatprep.subr.bf16.mxu0 0
    %235 = vmatpush2.bf16.msra.mxu0 0
    %236 = vmatprep.subr.bf16.mxu0 0
    %237 = vmatpush2.bf16.msra.mxu0 0
    %238 = vmatprep.subr.bf16.mxu0 0
    %239 = vmatpush2.bf16.msra.mxu0 0
    %240 = vmatprep.subr.bf16.mxu0 0
    %241 = vmatpush2.bf16.msra.mxu0 0
    %242 = vmatprep.subr.bf16.mxu0 0
    %243 = vmatpush2.bf16.msra.mxu0 0
    %244 = vmatprep.mubr.bf16.mxu0 0
    %245 = vmatmul.mubr.bf16.gmra.mxu0 %v210
    %v246 = vpop.f32.mrf.mxu0
    %v247 = vadd.f32 %v200, %v246
    %v248 = vpop.f32.mrf.mxu0
    %v249 = vpop.f32.mrf.mxu0
    %v250 = vadd.f32 %v200, %v249
    %v251 = vpop.f32.mrf.mxu0
    %252 = vdwg.mxu0
    %253 = vst [vmem:[#allocation2] sm:$0xff] %v247
    %254 = vst [vmem:[#allocation2 + $0x8] sm:$0xff] %v250
    // Predicated region
    $region30: #{tpu_custom_call.1} parent=1 // pred_check
      _
    $region31: #{tpu_custom_call.1} parent=1 // pred_check_branch
      %256 = sbr.rel (0) target = $region33
    $region32: #{tpu_custom_call.1} parent=1 // pred_region
      %s258 = ssub.s32 256, 256
      %259 = vsyncadd [#allocation3], %s258
      %s260 = sshll.u32 [#allocation2], 4
      %s261 = int_to_ptr.vmem [resolvable:$true] %s260
      %266 = dma.vmem_to_hbm [thread:$0]  %s261, 256, %s7, [#allocation3], 128, 128, 8
    $region33: #{tpu_custom_call.1} parent=1 // pred_fallthru
      _
    // Predicated region
    $region34: #{tpu_custom_call.1} parent=1 // pred_check
      _
    $region35: #{tpu_custom_call.1} parent=1 // pred_check_branch
      %268 = sbr.rel (0) target = $region37
    $region36: #{tpu_custom_call.1} parent=1 // pred_region
      %269 = dma.done [#allocation3], 256
    $region37: #{tpu_custom_call.1} parent=1 // pred_fallthru
      _
    %270 = vsyncpa [#allocation3], 1

</llo_original>
